<compile_context>
chip_gen: v5e
topology: v5e:2x2
jax: 0.10.0
libtpu: 0.0.40
codegen_flags: <defaults>
</compile_context>

<pallas_src>
import math

import jax
import jax.numpy as jnp
from jax.experimental import pallas as pl
from jax.experimental.pallas import tpu as pltpu


# ------------------------------ Pallas kernel ------------------------------

def _time_embedding_kernel(t_ref, freqs_ref, w1_ref, b1_ref, w2_ref, b2_ref,
                           o_ref, emb_sc):
    """Fused: sinusoidal embedding -> Linear -> SiLU -> Linear (tiled over features)."""
    j = pl.program_id(0)
    half = freqs_ref.shape[-1]          # static block shape

    @pl.when(j == 0)
    def _():
        # Sinusoidal timestep embedding computed on-chip once (EUP), stored bf16
        # as [cos | sin] so layer 1 is a single K=H matmul (no lane concat, no
        # per-step casts).
        args = t_ref[...] * freqs_ref[...]                 # [B,1]*[1,half] -> [B,half]
        emb_sc[:, :half] = jnp.cos(args).astype(emb_sc.dtype)
        emb_sc[:, half:] = jnp.sin(args).astype(emb_sc.dtype)
        # Init the resident accumulator with the layer-2 bias (folds the final
        # bias pass into the init — no trailing read-modify-write over [B, H]).
        o_ref[...] = jnp.broadcast_to(b2_ref[...], o_ref.shape)

    # ---- layer 1, column tile j:  [B, H] @ [H, tn] -> [B, tn]  (f32 accum)
    h = (jnp.dot(emb_sc[...], w1_ref[...], preferred_element_type=jnp.float32)
         + b1_ref[...])
    h = h * jax.nn.sigmoid(h)                              # SiLU in f32 (v5e-safe)

    # ---- layer 2 partial product:  acc += h_j @ W2[tile_j, :]
    o_ref[...] += jnp.dot(h.astype(w2_ref.dtype), w2_ref[...],
                          preferred_element_type=jnp.float32)


# ------------------------------ wrapper (JAX) ------------------------------

def _pick_block_n(B, H, w_bytes, budget_bytes=32 << 20):
    """Largest feature tile (divisor of H, multiple of 128 or H itself) whose
    buffered weight tiles + activations fit a conservative VMEM budget."""
    cands = sorted({H} | {c for c in range(128, H, 128) if H % c == 0},
                   reverse=True)
    for tn in cands:
        n_buf = 2 if tn == H else 3                      # Buffered(3) only if multi-step
        weight_vmem = n_buf * (H * tn + tn * H) * w_bytes
        act_vmem = B * H * (4 + w_bytes) + B * H * 4     # out f32 + emb + slack
        if weight_vmem + act_vmem <= budget_bytes:
            return tn
    return cands[-1]


def make_freqs(hidden_dim, max_period=10000.0):
    """Precompute the sinusoidal frequency table once (hoisted out of the forward)."""
    half = hidden_dim // 2
    return jnp.exp(
        -math.log(max_period) * jnp.arange(half, dtype=jnp.float32) / half
    )[None, :]                                            # [1, half]


def time_embedding_forward(params, t, *, block_n=None):
    """TimeEmbedding.forward(t) — t: [B] (or [B,1]) float timesteps -> [B, H] f32."""
    w1, b1, w2, b2 = params["w1"], params["b1"], params["w2"], params["b2"]
    freqs = params["freqs"]
    H = w1.shape[0]
    assert H % 2 == 0, "odd hidden_dim (PyTorch zero-pad path) not supported"
    half = H // 2
    t = t.reshape(-1).astype(jnp.float32)
    B = t.shape[0]
    t2 = t[:, None]                                       # [B, 1]

    w_bytes = jnp.dtype(w1.dtype).itemsize
    if block_n is None:
        block_n = _pick_block_n(B, H, w_bytes)
    tn = min(block_n, H)
    assert H % tn == 0, "hidden_dim must be a multiple of block_n (lane-dense tiles)"
    grid = (H // tn,)

    # --- weight BlockSpecs: deeper pipeline only when the weight DMA is streamed.
    if grid[0] > 1:
        w1_spec = pl.BlockSpec((H, tn), lambda j: (0, j), pipeline_mode=pl.Buffered(3))
        w2_spec = pl.BlockSpec((tn, H), lambda j: (j, 0), pipeline_mode=pl.Buffered(3))
        n_buf = 3
    else:
        w1_spec = pl.BlockSpec((H, tn), lambda j: (0, j))
        w2_spec = pl.BlockSpec((tn, H), lambda j: (j, 0))
        n_buf = 2

    # --- generation-safe VMEM sizing: compute the real need; only override the
    #     compiler default when it would not fit, and never request all of v7x.
    weight_vmem = n_buf * (H * tn + tn * H) * w_bytes
    act_vmem = B * H * (4 + w_bytes) + B * H * 4
    need = weight_vmem + act_vmem + (2 << 20)             # + compiler-internal slack
    vmem_limit = None if need <= (24 << 20) else min(int(need * 1.25), 48 << 20)

    cost = pl.CostEstimate(
        flops=4 * B * H * H,                              # two [B,H]x[H,H] matmuls
        transcendentals=B * half * 2 + B * H,             # cos, sin, sigmoid
        bytes_accessed=2 * H * H * w_bytes + B * H * 4 + (2 * H + B + half) * 4,
    )

    return pl.pallas_call(
        _time_embedding_kernel,
        out_shape=jax.ShapeDtypeStruct((B, H), jnp.float32),
        grid_spec=pltpu.PrefetchScalarGridSpec(
            num_scalar_prefetch=0,
            grid=grid,
            in_specs=[
                pl.BlockSpec((B, 1), lambda j: (0, 0)),        # t
                pl.BlockSpec((1, half), lambda j: (0, 0)),     # freqs
                w1_spec,                                       # W1 column tile (bf16)
                pl.BlockSpec((1, tn), lambda j: (0, j)),       # b1 tile (f32)
                w2_spec,                                       # W2 row tile (bf16)
                pl.BlockSpec((1, H), lambda j: (0, 0)),        # b2 (f32, fetched once)
            ],
            out_specs=pl.BlockSpec((B, H), lambda j: (0, 0)),  # resident accumulator
            scratch_shapes=[
                pltpu.VMEM((B, H), w1.dtype),                  # [cos | sin] embedding
            ],
        ),
        compiler_params=pltpu.CompilerParams(
            dimension_semantics=("arbitrary",),                # reduction over tiles
            vmem_limit_bytes=vmem_limit,
        ),
        cost_estimate=cost,
    )(t2, freqs, w1, b1, w2, b2)


# --------------------------- params / reference ----------------------------

def init_params(key, hidden_dim, weight_dtype=jnp.bfloat16):
    """Linear weights stored transposed as [in, out]; bf16 weights, f32 biases.
    The sinusoidal frequency table is precomputed here (hoisted out of forward)."""
    k1, k2, k3, k4 = jax.random.split(key, 4)
    s = 1.0 / math.sqrt(hidden_dim)
    return {
        "w1": (s * jax.random.normal(k1, (hidden_dim, hidden_dim), jnp.float32)
               ).astype(weight_dtype),
        "b1": s * jax.random.normal(k2, (1, hidden_dim), jnp.float32),
        "w2": (s * jax.random.normal(k3, (hidden_dim, hidden_dim), jnp.float32)
               ).astype(weight_dtype),
        "b2": s * jax.random.normal(k4, (1, hidden_dim), jnp.float32),
        "freqs": make_freqs(hidden_dim),
    }


def timestep_embedding(t, dim, max_period=10000.0):
    half = dim // 2
    freqs = jnp.exp(-math.log(max_period) * jnp.arange(half, dtype=jnp.float32) / half)
    args = t.astype(jnp.float32)[:, None] * freqs[None, :]
    emb = jnp.concatenate([jnp.cos(args), jnp.sin(args)], axis=-1)
    if dim % 2:
        emb = jnp.concatenate([emb, jnp.zeros_like(emb[:, :1])], axis=-1)
    return emb


def _ref_forward(params, t):
    """Pure-JAX reference (same bf16 operands / f32 accumulation as the kernel)."""
    H = params["w1"].shape[0]
    te = timestep_embedding(t.reshape(-1), H).astype(params["w1"].dtype)
    h = (jnp.dot(te, params["w1"], preferred_element_type=jnp.float32)
         + params["b1"])
    h = h * jax.nn.sigmoid(h)
    return (jnp.dot(h.astype(params["w2"].dtype), params["w2"],
                    preferred_element_type=jnp.float32) + params["b2"])


# ----------------------------------- main -----------------------------------

if __name__ == "__main__":
    hidden_dim = 256        # lane-dense (multiple of 128); real models use larger H
    batch = 8

    key = jax.random.PRNGKey(0)
    k_params, k_t = jax.random.split(key)

    params = init_params(k_params, hidden_dim)
    t = jax.random.randint(k_t, (batch,), 0, 1000).astype(jnp.float32)

    # Adaptive tiling: for H=256 the whole weight set fits VMEM -> grid=(1,).
    out = time_embedding_forward(params, t)
    out = jax.block_until_ready(out)

    ref = _ref_forward(params, t)
    assert out.shape == (batch, hidden_dim)
    assert bool(jnp.allclose(out, ref, atol=1e-2, rtol=1e-2)), \
        float(jnp.max(jnp.abs(out - ref)))

    print("KERNEL_OK")
</pallas_src>

<mosaic_0001>
module attributes {stable_mosaic.version = 11 : i64} {
  func.func @_time_embedding_kernel(%arg0: i32, %arg1: memref<8x1xf32, #tpu.memory_space<vmem>>, %arg2: memref<1x128xf32, #tpu.memory_space<vmem>>, %arg3: memref<256x256xbf16, #tpu.memory_space<vmem>>, %arg4: memref<1x256xf32, #tpu.memory_space<vmem>>, %arg5: memref<256x256xbf16, #tpu.memory_space<vmem>>, %arg6: memref<1x256xf32, #tpu.memory_space<vmem>>, %arg7: memref<8x256xf32, #tpu.memory_space<vmem>>, %arg8: memref<8x256xbf16, #tpu.memory_space<vmem>>) attributes {dimension_semantics = [#tpu.dimension_semantics<arbitrary>], iteration_bounds = array<i64: 1>, scalar_prefetch = 0 : i64, scratch_operands = 1 : i64, tpu.core_type = #tpu.core_type<tc>, window_params = [{pipeline_mode = #tpu.pipeline_mode<synchronous>, transform_indices = @transform_0, window_bounds = array<i64: 8, 1>}, {pipeline_mode = #tpu.pipeline_mode<synchronous>, transform_indices = @transform_1, window_bounds = array<i64: 1, 128>}, {transform_indices = @transform_2, window_bounds = array<i64: 256, 256>}, {transform_indices = @transform_3, window_bounds = array<i64: 1, 256>}, {transform_indices = @transform_4, window_bounds = array<i64: 256, 256>}, {pipeline_mode = #tpu.pipeline_mode<synchronous>, transform_indices = @transform_5, window_bounds = array<i64: 1, 256>}, {pipeline_mode = #tpu.pipeline_mode<synchronous>, transform_indices = @transform_6, window_bounds = array<i64: 8, 256>}]} {
    %c0_i32 = arith.constant 0 : i32
    %0 = arith.cmpi eq, %arg0, %c0_i32 : i32
    %1 = arith.extui %0 : i1 to i32
    %c0_i32_0 = arith.constant 0 : i32
    %2 = arith.cmpi ne, %1, %c0_i32_0 : i32
    scf.if %2 {
      %c0_14 = arith.constant 0 : index
      %c0_15 = arith.constant 0 : index
      %21 = vector.load %arg1[%c0_14, %c0_15] : memref<8x1xf32, #tpu.memory_space<vmem>>, vector<8x1xf32>
      %c0_16 = arith.constant 0 : index
      %c0_17 = arith.constant 0 : index
      %22 = vector.load %arg2[%c0_16, %c0_17] : memref<1x128xf32, #tpu.memory_space<vmem>>, vector<1x128xf32>
      %23 = vector.broadcast %21 : vector<8x1xf32> to vector<8x128xf32>
      %24 = vector.broadcast %22 : vector<1x128xf32> to vector<8x128xf32>
      %25 = arith.mulf %23, %24 : vector<8x128xf32>
      %26 = math.cos %25 : vector<8x128xf32>
      %27 = arith.truncf %26 : vector<8x128xf32> to vector<8x128xbf16>
      %c0_18 = arith.constant 0 : index
      %c0_19 = arith.constant 0 : index
      %28 = vector.load %arg8[%c0_18, %c0_19] : memref<8x256xbf16, #tpu.memory_space<vmem>>, vector<8x128xbf16>
      tpu.vector_store %arg8[%c0_18, %c0_19], %27 {strides = array<i32>} : memref<8x256xbf16, #tpu.memory_space<vmem>>, vector<8x128xbf16>,
      %29 = math.sin %25 : vector<8x128xf32>
      %30 = arith.truncf %29 : vector<8x128xf32> to vector<8x128xbf16>
      %c0_20 = arith.constant 0 : index
      %c128 = arith.constant 128 : index
      %31 = vector.load %arg8[%c0_20, %c128] : memref<8x256xbf16, #tpu.memory_space<vmem>>, vector<8x128xbf16>
      tpu.vector_store %arg8[%c0_20, %c128], %30 {strides = array<i32>} : memref<8x256xbf16, #tpu.memory_space<vmem>>, vector<8x128xbf16>,
      %c0_21 = arith.constant 0 : index
      %c0_22 = arith.constant 0 : index
      %32 = vector.load %arg6[%c0_21, %c0_22] : memref<1x256xf32, #tpu.memory_space<vmem>>, vector<1x256xf32>
      %33 = vector.shape_cast %32 : vector<1x256xf32> to vector<1x256xf32>
      %34 = vector.broadcast %33 : vector<1x256xf32> to vector<8x256xf32>
      %c0_23 = arith.constant 0 : index
      %c0_24 = arith.constant 0 : index
      %35 = vector.load %arg7[%c0_23, %c0_24] : memref<8x256xf32, #tpu.memory_space<vmem>>, vector<8x256xf32>
      tpu.vector_store %arg7[%c0_23, %c0_24], %34 {strides = array<i32>} : memref<8x256xf32, #tpu.memory_space<vmem>>, vector<8x256xf32>,
    } else {
    }
    %c0 = arith.constant 0 : index
    %c0_1 = arith.constant 0 : index
    %3 = vector.load %arg8[%c0, %c0_1] : memref<8x256xbf16, #tpu.memory_space<vmem>>, vector<8x256xbf16>
    %c0_2 = arith.constant 0 : index
    %c0_3 = arith.constant 0 : index
    %4 = vector.load %arg3[%c0_2, %c0_3] : memref<256x256xbf16, #tpu.memory_space<vmem>>, vector<256x256xbf16>
    %cst = arith.constant dense<0.000000e+00> : vector<8x256xf32>
    %5 = tpu.matmul %3, %4, %cst {dimension_numbers = #tpu.dot_dimension_numbers<[1], [0], [0], [1], [0, 0, 1, 1], [], []>} : vector<8x256xbf16>, vector<256x256xbf16>, vector<8x256xf32> -> vector<8x256xf32>
    %c0_4 = arith.constant 0 : index
    %c0_5 = arith.constant 0 : index
    %6 = vector.load %arg4[%c0_4, %c0_5] : memref<1x256xf32, #tpu.memory_space<vmem>>, vector<1x256xf32>
    %7 = vector.broadcast %6 : vector<1x256xf32> to vector<8x256xf32>
    %8 = arith.addf %5, %7 : vector<8x256xf32>
    %9 = arith.negf %8 : vector<8x256xf32>
    %10 = math.exp %9 : vector<8x256xf32>
    %cst_6 = arith.constant 1.000000e+00 : f32
    %11 = vector.broadcast %cst_6 : f32 to vector<8x256xf32>
    %12 = arith.addf %11, %10 : vector<8x256xf32>
    %13 = arith.divf %11, %12 : vector<8x256xf32>
    %14 = arith.mulf %8, %13 : vector<8x256xf32>
    %c0_7 = arith.constant 0 : index
    %c0_8 = arith.constant 0 : index
    %15 = vector.load %arg7[%c0_7, %c0_8] : memref<8x256xf32, #tpu.memory_space<vmem>>, vector<8x256xf32>
    %16 = arith.truncf %14 : vector<8x256xf32> to vector<8x256xbf16>
    %c0_9 = arith.constant 0 : index
    %c0_10 = arith.constant 0 : index
    %17 = vector.load %arg5[%c0_9, %c0_10] : memref<256x256xbf16, #tpu.memory_space<vmem>>, vector<256x256xbf16>
    %cst_11 = arith.constant dense<0.000000e+00> : vector<8x256xf32>
    %18 = tpu.matmul %16, %17, %cst_11 {dimension_numbers = #tpu.dot_dimension_numbers<[1], [0], [0], [1], [0, 0, 1, 1], [], []>} : vector<8x256xbf16>, vector<256x256xbf16>, vector<8x256xf32> -> vector<8x256xf32>
    %19 = arith.addf %15, %18 : vector<8x256xf32>
    %c0_12 = arith.constant 0 : index
    %c0_13 = arith.constant 0 : index
    %20 = vector.load %arg7[%c0_12, %c0_13] : memref<8x256xf32, #tpu.memory_space<vmem>>, vector<8x256xf32>
    tpu.vector_store %arg7[%c0_12, %c0_13], %19 {strides = array<i32>} : memref<8x256xf32, #tpu.memory_space<vmem>>, vector<8x256xf32>,
    return
  }
  func.func @transform_0(%arg0: i32) -> (i32, i32) {
    %c0_i32 = arith.constant 0 : i32
    %c0_i32_0 = arith.constant 0 : i32
    %c0_i32_1 = arith.constant 0 : i32
    return %c0_i32, %c0_i32_0 : i32, i32
  }
  func.func @transform_1(%arg0: i32) -> (i32, i32) {
    %c0_i32 = arith.constant 0 : i32
    %c0_i32_0 = arith.constant 0 : i32
    %c0_i32_1 = arith.constant 0 : i32
    return %c0_i32, %c0_i32_0 : i32, i32
  }
  func.func @transform_2(%arg0: i32) -> (i32, i32) {
    %c0_i32 = arith.constant 0 : i32
    %c0_i32_0 = arith.constant 0 : i32
    return %c0_i32, %arg0 : i32, i32
  }
  func.func @transform_3(%arg0: i32) -> (i32, i32) {
    %c0_i32 = arith.constant 0 : i32
    %c0_i32_0 = arith.constant 0 : i32
    return %c0_i32, %arg0 : i32, i32
  }
  func.func @transform_4(%arg0: i32) -> (i32, i32) {
    %c0_i32 = arith.constant 0 : i32
    %c0_i32_0 = arith.constant 0 : i32
    return %arg0, %c0_i32 : i32, i32
  }
  func.func @transform_5(%arg0: i32) -> (i32, i32) {
    %c0_i32 = arith.constant 0 : i32
    %c0_i32_0 = arith.constant 0 : i32
    %c0_i32_1 = arith.constant 0 : i32
    return %c0_i32, %c0_i32_0 : i32, i32
  }
  func.func @transform_6(%arg0: i32) -> (i32, i32) {
    %c0_i32 = arith.constant 0 : i32
    %c0_i32_0 = arith.constant 0 : i32
    %c0_i32_1 = arith.constant 0 : i32
    return %c0_i32, %c0_i32_0 : i32, i32
  }
}

</mosaic_0001>

<llo_original>
// kernel: tpu_custom_call.1
$region0: #{tpu_custom_call.1}
  #allocation0 [shape = 'u32[]', space=smem, size = 0x4, offset = 0x4, fixed_abs, tag = 'smem constant byte address 0x4 - core index']
  #allocation1 [shape = 'u32[72,128]{1,0:T(1,128)}', space=vmem, size = 0x9000, scoped, tag = 'internal scratch']
  #allocation2 [shape = 'bf16[8,256]{1,0:T(8,128)(2,1)}', space=vmem, size = 0x1000, scoped, tag = 'scratch operand']
  %s0 = inlined_call_operand.vmem [shape: f32[8,1], index: 0, kind: input, shape index: {}]
  %s1 = inlined_call_operand.vmem [shape: f32[1,128], index: 1, kind: input, shape index: {}]
  %s2 = inlined_call_operand.hbm [shape: bf16[256,256], index: 2, kind: input, shape index: {}]
  %s3 = inlined_call_operand.vmem [shape: f32[1,256], index: 3, kind: input, shape index: {}]
  %s4 = inlined_call_operand.hbm [shape: bf16[256,256], index: 4, kind: input, shape index: {}]
  %s5 = inlined_call_operand.vmem [shape: f32[1,256], index: 5, kind: input, shape index: {}]
  %s6 = inlined_call_operand.hbm [shape: f32[8,256], index: 6, kind: output, shape index: {}]
  %s7 = sld [smem:[#allocation0]]
  $region46: #{tpu_custom_call.1} parent=0
    _
  %s9 = ssub.s32 1, %s7
  %s10 = scalar_select 0, %s9, %s7
  $region1: #{tpu_custom_call.1} parent=0
    #allocation3 [shape = 'u8[131072]{0}', space=vmem, size = 0x20000, scoped, tag = 'input window, operand 2, single buffered']
    #allocation4 [shape = 's32[1]{0}', space=sflag, size = 0x4, scoped, tag = 'scoped memory for tpu_custom_call.1']
    #allocation5 [shape = 's32[1]{0}', space=sflag, size = 0x4, scoped, tag = 'scoped memory for tpu_custom_call.1']
    #allocation6 [shape = 'u8[131072]{0}', space=vmem, size = 0x20000, scoped, tag = 'input window, operand 4, single buffered']
    #allocation7 [shape = 's32[1]{0}', space=sflag, size = 0x4, scoped, tag = 'scoped memory for tpu_custom_call.1']
    #allocation8 [shape = 'u8[8192]{0}', space=vmem, size = 0x2000, scoped, tag = 'output window, operand 0, single buffered']
    %11 = vsyncpa [#allocation4], 0
    %12 = vsyncpa [#allocation7], 0
    %13 = vsyncpa [#allocation5], 0
    // Predicated region
    $region2: #{tpu_custom_call.1} parent=1 // pred_check
      _
    $region3: #{tpu_custom_call.1} parent=1 // pred_check_branch
      %15 = sbr.rel (0) target = $region5
    $region4: #{tpu_custom_call.1} parent=1 // pred_region
      _
    $region5: #{tpu_custom_call.1} parent=1 // pred_fallthru
      _
    // Predicated region
    $region6: #{tpu_custom_call.1} parent=1 // pred_check
      _
    $region7: #{tpu_custom_call.1} parent=1 // pred_check_branch
      %17 = sbr.rel (0) target = $region9
    $region8: #{tpu_custom_call.1} parent=1 // pred_region
      _
    $region9: #{tpu_custom_call.1} parent=1 // pred_fallthru
      _
    // Predicated region
    $region10: #{tpu_custom_call.1} parent=1 // pred_check
      _
    $region11: #{tpu_custom_call.1} parent=1 // pred_check_branch
      %19 = sbr.rel (0) target = $region13
    $region12: #{tpu_custom_call.1} parent=1 // pred_region
      %21 = vsyncadd [#allocation4], 0
      %s22 = sshll.u32 %s2, 4
      %s23 = int_to_ptr.hbm [resolvable:$true] %s22
      %s24 = sshll.u32 [#allocation3], 4
      %s25 = int_to_ptr.vmem [resolvable:$true] %s24
      %30 = dma.hbm_to_vmem [thread:$0]  %s23, 4096, %s25, [#allocation4], 128, 128, 8
    $region13: #{tpu_custom_call.1} parent=1 // pred_fallthru
      _
    // Predicated region
    $region14: #{tpu_custom_call.1} parent=1 // pred_check
      _
    $region15: #{tpu_custom_call.1} parent=1 // pred_check_branch
      %32 = sbr.rel (0) target = $region17
    $region16: #{tpu_custom_call.1} parent=1 // pred_region
      _
    $region17: #{tpu_custom_call.1} parent=1 // pred_fallthru
      _
    // Predicated region
    $region18: #{tpu_custom_call.1} parent=1 // pred_check
      _
    $region19: #{tpu_custom_call.1} parent=1 // pred_check_branch
      %34 = sbr.rel (0) target = $region21
    $region20: #{tpu_custom_call.1} parent=1 // pred_region
      %36 = vsyncadd [#allocation7], 0
      %s37 = sshll.u32 %s4, 4
      %s38 = int_to_ptr.hbm [resolvable:$true] %s37
      %s39 = sshll.u32 [#allocation6], 4
      %s40 = int_to_ptr.vmem [resolvable:$true] %s39
      %45 = dma.hbm_to_vmem [thread:$0]  %s38, 4096, %s40, [#allocation7], 128, 128, 8
    $region21: #{tpu_custom_call.1} parent=1 // pred_fallthru
      _
    // Predicated region
    $region22: #{tpu_custom_call.1} parent=1 // pred_check
      _
    $region23: #{tpu_custom_call.1} parent=1 // pred_check_branch
      %47 = sbr.rel (0) target = $region25
    $region24: #{tpu_custom_call.1} parent=1 // pred_region
      _
    $region25: #{tpu_custom_call.1} parent=1 // pred_fallthru
      _
    // Predicated region
    $region26: #{tpu_custom_call.1} parent=1 // pred_check
      _
    $region27: #{tpu_custom_call.1} parent=1 // pred_check_branch
      %49 = sbr.rel (0) target = $region29
    $region28: #{tpu_custom_call.1} parent=1 // pred_region
      %51 = dma.done [#allocation4], 4096
    $region29: #{tpu_custom_call.1} parent=1 // pred_fallthru
      _
    // Predicated region
    $region30: #{tpu_custom_call.1} parent=1 // pred_check
      _
    $region31: #{tpu_custom_call.1} parent=1 // pred_check_branch
      %53 = sbr.rel (0) target = $region33
    $region32: #{tpu_custom_call.1} parent=1 // pred_region
      %55 = dma.done [#allocation7], 4096
    $region33: #{tpu_custom_call.1} parent=1 // pred_fallthru
      _
    %p56 = scmp.eq.s32.totalorder 0, 0
    // Predicated region
    $region34: #{tpu_custom_call.1} parent=1 // pred_check
      %p57 = pneg %p56
    $region35: #{tpu_custom_call.1} parent=1 // pred_check_branch
      %59 = sbr.rel (%p57) target = $region37
    $region36: #{tpu_custom_call.1} parent=1 // pred_region
      %v60 = vld [vmem:[%s0] sm:$0xff]
      %v61 = vld [vmem:[%s1] sm:$0x1]
      %63 = vset.pattern.permute.xlu0 0
      %64 = vperm.xlu0 %63, %v60
      %v65 = vpop.permute.xlu0 %64
      %v68 = vperm.slane %v61, 0
      %v70 = vmul.f32 %v65, %v68
      %v71 = vand.u32 2147483647, %v70
      %vm72 = vcmp.le.f32.partialorder %v71, 0.7853982
      %vm73 = vcmp.lt.s32.totalorder %v70, 0
      %v74 = vand.u32 %v70, 2139095040
      %v75 = vshrl.u32 %v74, 23
      %v76 = vsub.s32 %v75, 127
      %v77 = vand.u32 2147483647, %v70
      %v78 = vand.u32 %v77, 8388607
      %v79 = vor.u32 %v78, 8388608
      %v80 = vsub.s32 0, %v79
      %v81 = vadd.s32 %v76, 1
      %vm82 = vcmp.gt.s32.totalorder %v81, 0
      %v83 = vsel %vm82, %v81, 0
      %v84 = vshrl.u32 %v83, 5
      %v85 = vand.u32 %v83, 31
      %v86 = vsub.s32 32, %v85
      %v87 = vshrl.u32 683565275, %v86
      %v88 = vshll.u32 683565275, %v85
      %v89 = vshrl.u32 2475754826, %v86
      %v90 = vor.u32 %v88, %v89
      %v91 = vshll.u32 2475754826, %v85
      %v92 = vshrl.u32 2131351028, %v86
      %v93 = vor.u32 %v91, %v92
      %v94 = vshll.u32 2131351028, %v85
      %v95 = vshrl.u32 2102212464, %v86
      %v96 = vor.u32 %v94, %v95
      %v97 = vshll.u32 2102212464, %v85
      %v98 = vshrl.u32 920167782, %v86
      %v99 = vor.u32 %v97, %v98
      %v100 = vshll.u32 920167782, %v85
      %v101 = vshrl.u32 1326507024, %v86
      %v102 = vor.u32 %v100, %v101
      %vm103 = vcmp.lt.s32.totalorder %v84, 1
      %vm104 = vcmp.lt.s32.totalorder %v84, 2
      %vm105 = vcmp.lt.s32.totalorder %v84, 3
      %vm106 = vcmp.lt.s32.totalorder %v84, 4
      %v107 = vsel %vm103, %v87, %v90
      %v108 = vsel %vm106, %v96, 2102212464
      %v109 = vsel %vm105, %v93, %v108
      %v110 = vsel %vm104, %v107, %v109
      %v111 = vsel %vm103, %v90, %v93
      %v112 = vsel %vm106, %v99, 920167782
      %v113 = vsel %vm105, %v96, %v112
      %v114 = vsel %vm104, %v111, %v113
      %v115 = vsel %vm103, %v93, %v96
      %v116 = vsel %vm106, %v102, 1326507024
      %v117 = vsel %vm105, %v99, %v116
      %v118 = vsel %vm104, %v115, %v117
      %v119 = vshll.u32 %v79, 8
      %v120 = vand.u32 %v119, 65535
      %v121 = vshrl.u32 %v119, 16
      %v122 = vand.u32 %v118, 65535
      %v123 = vshrl.u32 %v118, 16
      %v124 = vmul.u32 %v120, %v122
      %v125 = vmul.u32 %v120, %v123
      %v126 = vmul.u32 %v121, %v122
      %v127 = vmul.u32 %v121, %v123
      %v128 = vshll.u32 %v125, 16
      %v129 = vshrl.u32 %v125, 16
      %v130 = vshll.u32 %v126, 16
      %v131 = vshrl.u32 %v126, 16
      %vm132 = vc.u32 %v124, %v128
      %v133 = vsel %vm132, 1, 0
      %v134 = vadd.s32 %v124, %v128
      %v135 = vadd.s32 %v127, %v133
      %vm136 = vc.u32 %v134, %v130
      %v137 = vsel %vm136, 1, 0
      %v138 = vadd.s32 %v134, %v130
      %v139 = vadd.s32 %v135, %v137
      %v140 = vadd.s32 %v139, %v129
      %v141 = vadd.s32 %v140, %v131
      %v142 = vand.u32 %v119, 65535
      %v143 = vshrl.u32 %v119, 16
      %v144 = vand.u32 %v114, 65535
      %v145 = vshrl.u32 %v114, 16
      %v146 = vmul.u32 %v142, %v144
      %v147 = vmul.u32 %v142, %v145
      %v148 = vmul.u32 %v143, %v144
      %v149 = vmul.u32 %v143, %v145
      %v150 = vshll.u32 %v147, 16
      %v151 = vshrl.u32 %v147, 16
      %v152 = vshll.u32 %v148, 16
      %v153 = vshrl.u32 %v148, 16
      %vm154 = vc.u32 %v146, %v150
      %v155 = vsel %vm154, 1, 0
      %v156 = vadd.s32 %v146, %v150
      %v157 = vadd.s32 %v149, %v155
      %vm158 = vc.u32 %v156, %v152
      %v159 = vsel %vm158, 1, 0
      %v160 = vadd.s32 %v156, %v152
      %v161 = vadd.s32 %v157, %v159
      %v162 = vadd.s32 %v161, %v151
      %v163 = vadd.s32 %v162, %v153
      %v164 = vmul.u32 %v119, %v110
      %v165 = vadd.s32 %v141, %v160
      %vm166 = vc.u32 %v141, %v160
      %v167 = vadd.s32 %v163, 1
      %v168 = vsel %vm166, %v167, %v163
      %v169 = vadd.s32 %v164, %v168
      %v170 = vadd.s32 %v169, 536870912
      %v171 = vshrl.u32 %v170, 30
      %v172 = vshll.u32 %v171, 30
      %v173 = vsub.s32 %v169, %v172
      %vm174 = vcmp.lt.s32.totalorder %v173, 0
      %v175 = vsub.s32 0, %v173
      %v176 = vsel %vm174, %v175, %v173
      %v177 = vclz %v176
      %v178 = vsub.s32 %v177, 2
      %vm179 = vcmp.gt.s32.totalorder 0, %v178
      %v180 = vsel %vm179, 0, %v178
      %v181 = vsub.s32 32, %v180
      %v182 = vshll.u32 %v173, %v180
      %v183 = vshrl.u32 %v165, %v181
      %v184 = vor.u32 %v182, %v183
      %v185 = vsub.s32 4294967266, %v180
      %v186 = vadd.s32 %v185, 127
      %v187 = vshll.u32 %v186, 23
      %v188 = vor.u32 4788187, %v187
      %v189 = vand.u32 2147483647, %v188
      %v191 = vcvt.s32.f32 %v184
      %v192 = vmul.f32 %v191, %v189
      %v193 = vxor.u32 %v192, 2147483648
      %v194 = vsel %vm73, %v193, %v192
      %v195 = vsub.s32 4, %v171
      %v196 = vsel %vm73, %v195, %v171
      %v197 = vsel %vm72, %v70, %v194
      %v198 = vsel %vm72, 0, %v196
      %v199 = vmul.f32 %v197, %v197
      %v200 = vmul.f32 %v199, -0.001358992
      %v201 = vadd.f32 %v200, 0.041655596
      %v202 = vmul.f32 %v199, %v201
      %v203 = vadd.f32 %v202, -0.4999988
      %v204 = vmul.f32 %v199, %v203
      %v205 = vadd.f32 1.0, %v204
      %v206 = vmul.f32 %v197, %v197
      %v207 = vmul.f32 %v206, -0.00019511016
      %v208 = vadd.f32 %v207, 0.008332121
      %v209 = vmul.f32 %v206, %v208
      %v210 = vadd.f32 %v209, -0.16666654
      %v211 = vmul.f32 %v206, %v210
      %v212 = vadd.f32 %v211, 1.0
      %v213 = vmul.f32 %v212, %v197
      %vm214 = vweird.f32 %v70
      %v215 = vand.u32 %v198, 3
      %vm216 = vcmp.lt.s32.totalorder %v215, 2
      %vm217 = vcmp.eq.s32.totalorder %v215, 0
      %v218 = vxor.u32 %v213, 2147483648
      %v219 = vsel %vm217, %v205, %v218
      %vm220 = vcmp.eq.s32.totalorder %v215, 2
      %v221 = vxor.u32 %v205, 2147483648
      %v222 = vsel %vm220, %v221, %v213
      %v223 = vsel %vm216, %v219, %v222
      %v224 = vsel %vm214, nan, %v223
      %v225 = vpack.c.bf16 %v224, %v224
      %226 = vst [vmem:[#allocation2] sm:$0xf] %v225
      %v227 = vand.u32 2147483647, %v70
      %vm228 = vcmp.le.f32.partialorder %v227, 0.7853982
      %vm229 = vcmp.lt.s32.totalorder %v70, 0
      %v230 = vand.u32 %v70, 2139095040
      %v231 = vshrl.u32 %v230, 23
      %v232 = vsub.s32 %v231, 127
      %v233 = vand.u32 2147483647, %v70
      %v234 = vand.u32 %v233, 8388607
      %v235 = vor.u32 %v234, 8388608
      %v236 = vsub.s32 0, %v235
      %v237 = vadd.s32 %v232, 1
      %vm238 = vcmp.gt.s32.totalorder %v237, 0
      %v239 = vsel %vm238, %v237, 0
      %v240 = vshrl.u32 %v239, 5
      %v241 = vand.u32 %v239, 31
      %v242 = vsub.s32 32, %v241
      %v243 = vshrl.u32 683565275, %v242
      %v244 = vshll.u32 683565275, %v241
      %v245 = vshrl.u32 2475754826, %v242
      %v246 = vor.u32 %v244, %v245
      %v247 = vshll.u32 2475754826, %v241
      %v248 = vshrl.u32 2131351028, %v242
      %v249 = vor.u32 %v247, %v248
      %v250 = vshll.u32 2131351028, %v241
      %v251 = vshrl.u32 2102212464, %v242
      %v252 = vor.u32 %v250, %v251
      %v253 = vshll.u32 2102212464, %v241
      %v254 = vshrl.u32 920167782, %v242
      %v255 = vor.u32 %v253, %v254
      %v256 = vshll.u32 920167782, %v241
      %v257 = vshrl.u32 1326507024, %v242
      %v258 = vor.u32 %v256, %v257
      %vm259 = vcmp.lt.s32.totalorder %v240, 1
      %vm260 = vcmp.lt.s32.totalorder %v240, 2
      %vm261 = vcmp.lt.s32.totalorder %v240, 3
      %vm262 = vcmp.lt.s32.totalorder %v240, 4
      %v263 = vsel %vm259, %v243, %v246
      %v264 = vsel %vm262, %v252, 2102212464
      %v265 = vsel %vm261, %v249, %v264
      %v266 = vsel %vm260, %v263, %v265
      %v267 = vsel %vm259, %v246, %v249
      %v268 = vsel %vm262, %v255, 920167782
      %v269 = vsel %vm261, %v252, %v268
      %v270 = vsel %vm260, %v267, %v269
      %v271 = vsel %vm259, %v249, %v252
      %v272 = vsel %vm262, %v258, 1326507024
      %v273 = vsel %vm261, %v255, %v272
      %v274 = vsel %vm260, %v271, %v273
      %v275 = vshll.u32 %v235, 8
      %v276 = vand.u32 %v275, 65535
      %v277 = vshrl.u32 %v275, 16
      %v278 = vand.u32 %v274, 65535
      %v279 = vshrl.u32 %v274, 16
      %v280 = vmul.u32 %v276, %v278
      %v281 = vmul.u32 %v276, %v279
      %v282 = vmul.u32 %v277, %v278
      %v283 = vmul.u32 %v277, %v279
      %v284 = vshll.u32 %v281, 16
      %v285 = vshrl.u32 %v281, 16
      %v286 = vshll.u32 %v282, 16
      %v287 = vshrl.u32 %v282, 16
      %vm288 = vc.u32 %v280, %v284
      %v289 = vsel %vm288, 1, 0
      %v290 = vadd.s32 %v280, %v284
      %v291 = vadd.s32 %v283, %v289
      %vm292 = vc.u32 %v290, %v286
      %v293 = vsel %vm292, 1, 0
      %v294 = vadd.s32 %v290, %v286
      %v295 = vadd.s32 %v291, %v293
      %v296 = vadd.s32 %v295, %v285
      %v297 = vadd.s32 %v296, %v287
      %v298 = vand.u32 %v275, 65535
      %v299 = vshrl.u32 %v275, 16
      %v300 = vand.u32 %v270, 65535
      %v301 = vshrl.u32 %v270, 16
      %v302 = vmul.u32 %v298, %v300
      %v303 = vmul.u32 %v298, %v301
      %v304 = vmul.u32 %v299, %v300
      %v305 = vmul.u32 %v299, %v301
      %v306 = vshll.u32 %v303, 16
      %v307 = vshrl.u32 %v303, 16
      %v308 = vshll.u32 %v304, 16
      %v309 = vshrl.u32 %v304, 16
      %vm310 = vc.u32 %v302, %v306
      %v311 = vsel %vm310, 1, 0
      %v312 = vadd.s32 %v302, %v306
      %v313 = vadd.s32 %v305, %v311
      %vm314 = vc.u32 %v312, %v308
      %v315 = vsel %vm314, 1, 0
      %v316 = vadd.s32 %v312, %v308
      %v317 = vadd.s32 %v313, %v315
      %v318 = vadd.s32 %v317, %v307
      %v319 = vadd.s32 %v318, %v309
      %v320 = vmul.u32 %v275, %v266
      %v321 = vadd.s32 %v297, %v316
      %vm322 = vc.u32 %v297, %v316
      %v323 = vadd.s32 %v319, 1
      %v324 = vsel %vm322, %v323, %v319
      %v325 = vadd.s32 %v320, %v324
      %v326 = vadd.s32 %v325, 536870912
      %v327 = vshrl.u32 %v326, 30
      %v328 = vshll.u32 %v327, 30
      %v329 = vsub.s32 %v325, %v328
      %vm330 = vcmp.lt.s32.totalorder %v329, 0
      %v331 = vsub.s32 0, %v329
      %v332 = vsel %vm330, %v331, %v329
      %v333 = vclz %v332
      %v334 = vsub.s32 %v333, 2
      %vm335 = vcmp.gt.s32.totalorder 0, %v334
      %v336 = vsel %vm335, 0, %v334
      %v337 = vsub.s32 32, %v336
      %v338 = vshll.u32 %v329, %v336
      %v339 = vshrl.u32 %v321, %v337
      %v340 = vor.u32 %v338, %v339
      %v341 = vsub.s32 4294967266, %v336
      %v342 = vadd.s32 %v341, 127
      %v343 = vshll.u32 %v342, 23
      %v344 = vor.u32 4788187, %v343
      %v345 = vand.u32 2147483647, %v344
      %v347 = vcvt.s32.f32 %v340
      %v348 = vmul.f32 %v347, %v345
      %v349 = vxor.u32 %v348, 2147483648
      %v350 = vsel %vm229, %v349, %v348
      %v351 = vsub.s32 4, %v327
      %v352 = vsel %vm229, %v351, %v327
      %v353 = vsel %vm228, %v70, %v350
      %v354 = vsel %vm228, 0, %v352
      %v355 = vmul.f32 %v353, %v353
      %v356 = vmul.f32 %v355, -0.001358992
      %v357 = vadd.f32 %v356, 0.041655596
      %v358 = vmul.f32 %v355, %v357
      %v359 = vadd.f32 %v358, -0.4999988
      %v360 = vmul.f32 %v355, %v359
      %v361 = vadd.f32 1.0, %v360
      %v362 = vmul.f32 %v353, %v353
      %v363 = vmul.f32 %v362, -0.00019511016
      %v364 = vadd.f32 %v363, 0.008332121
      %v365 = vmul.f32 %v362, %v364
      %v366 = vadd.f32 %v365, -0.16666654
      %v367 = vmul.f32 %v362, %v366
      %v368 = vadd.f32 %v367, 1.0
      %v369 = vmul.f32 %v368, %v353
      %vm370 = vweird.f32 %v70
      %v371 = vadd.s32 %v354, 3
      %v372 = vand.u32 %v371, 3
      %vm373 = vcmp.lt.s32.totalorder %v372, 2
      %vm374 = vcmp.eq.s32.totalorder %v372, 0
      %v375 = vxor.u32 %v369, 2147483648
      %v376 = vsel %vm374, %v361, %v375
      %vm377 = vcmp.eq.s32.totalorder %v372, 2
      %v378 = vxor.u32 %v361, 2147483648
      %v379 = vsel %vm377, %v378, %v369
      %v380 = vsel %vm373, %v376, %v379
      %v381 = vsel %vm370, nan, %v380
      %v382 = vpack.c.bf16 %v381, %v381
      %383 = vst [vmem:[#allocation2 + $0x4] sm:$0xf] %v382
      %v384 = vld [vmem:[%s5] sm:$0x3]
      %v386 = vperm.slane %v384, 0
      %v387 = vperm.slane %v384, 1
      %390 = vst [vmem:[#allocation8] sm:$0xff] %v386
      %391 = vst [vmem:[#allocation8 + $0x8] sm:$0xff] %v387
    $region37: #{tpu_custom_call.1} parent=1 // pred_fallthru
      _
    %v392 = vld [vmem:[#allocation2] sm:$0xff]
    %v393 = vld [vmem:[#allocation3] sm:$0xff]
    %v394 = vld [vmem:[#allocation3 + $0x8] sm:$0xff]
    %v395 = vld [vmem:[#allocation3 + $0x10] sm:$0xff]
    %v396 = vld [vmem:[#allocation3 + $0x18] sm:$0xff]
    %v397 = vld [vmem:[#allocation3 + $0x20] sm:$0xff]
    %v398 = vld [vmem:[#allocation3 + $0x28] sm:$0xff]
    %v399 = vld [vmem:[#allocation3 + $0x30] sm:$0xff]
    %v400 = vld [vmem:[#allocation3 + $0x38] sm:$0xff]
    %v401 = vld [vmem:[#allocation3 + $0x40] sm:$0xff]
    %v402 = vld [vmem:[#allocation3 + $0x48] sm:$0xff]
    %v403 = vld [vmem:[#allocation3 + $0x50] sm:$0xff]
    %v404 = vld [vmem:[#allocation3 + $0x58] sm:$0xff]
    %v405 = vld [vmem:[#allocation3 + $0x60] sm:$0xff]
    %v406 = vld [vmem:[#allocation3 + $0x68] sm:$0xff]
    %v407 = vld [vmem:[#allocation3 + $0x70] sm:$0xff]
    %v408 = vld [vmem:[#allocation3 + $0x78] sm:$0xff]
    %v409 = vld [vmem:[#allocation3 + $0x80] sm:$0xff]
    %v410 = vld [vmem:[#allocation3 + $0x88] sm:$0xff]
    %v411 = vld [vmem:[#allocation3 + $0x90] sm:$0xff]
    %v412 = vld [vmem:[#allocation3 + $0x98] sm:$0xff]
    %v413 = vld [vmem:[#allocation3 + $0xa0] sm:$0xff]
    %v414 = vld [vmem:[#allocation3 + $0xa8] sm:$0xff]
    %v415 = vld [vmem:[#allocation3 + $0xb0] sm:$0xff]
    %v416 = vld [vmem:[#allocation3 + $0xb8] sm:$0xff]
    %v417 = vld [vmem:[#allocation3 + $0xc0] sm:$0xff]
    %v418 = vld [vmem:[#allocation3 + $0xc8] sm:$0xff]
    %v419 = vld [vmem:[#allocation3 + $0xd0] sm:$0xff]
    %v420 = vld [vmem:[#allocation3 + $0xd8] sm:$0xff]
    %v421 = vld [vmem:[#allocation3 + $0xe0] sm:$0xff]
    %v422 = vld [vmem:[#allocation3 + $0xe8] sm:$0xff]
    %v423 = vld [vmem:[#allocation3 + $0xf0] sm:$0xff]
    %v424 = vld [vmem:[#allocation3 + $0xf8] sm:$0xff]
    %v425 = vld [vmem:[%s3] sm:$0x3]
    %v427 = vperm.slane %v425, 0
    %v428 = vperm.slane %v425, 1
    %v432 = vunpack.c.l.b16 %v392
    %v433 = vunpack.c.h.b16 %v392
    %v434 = vpack.c.b16 %v432, %v432
    %v435 = vpack.c.b16 %v433, %v433
    %v470 = vunpack.c.l.b16 %v393
    %v471 = vunpack.c.h.b16 %v393
    %v472 = vunpack.c.l.b16 %v394
    %v473 = vunpack.c.h.b16 %v394
    %v474 = vunpack.c.l.b16 %v395
    %v475 = vunpack.c.h.b16 %v395
    %v476 = vunpack.c.l.b16 %v396
    %v477 = vunpack.c.h.b16 %v396
    %v478 = vunpack.c.l.b16 %v397
    %v479 = vunpack.c.h.b16 %v397
    %v480 = vunpack.c.l.b16 %v398
    %v481 = vunpack.c.h.b16 %v398
    %v482 = vunpack.c.l.b16 %v399
    %v483 = vunpack.c.h.b16 %v399
    %v484 = vunpack.c.l.b16 %v400
    %v485 = vunpack.c.h.b16 %v400
    %v486 = vunpack.c.l.b16 %v401
    %v487 = vunpack.c.h.b16 %v401
    %v488 = vunpack.c.l.b16 %v402
    %v489 = vunpack.c.h.b16 %v402
    %v490 = vunpack.c.l.b16 %v403
    %v491 = vunpack.c.h.b16 %v403
    %v492 = vunpack.c.l.b16 %v404
    %v493 = vunpack.c.h.b16 %v404
    %v494 = vunpack.c.l.b16 %v405
    %v495 = vunpack.c.h.b16 %v405
    %v496 = vunpack.c.l.b16 %v406
    %v497 = vunpack.c.h.b16 %v406
    %v498 = vunpack.c.l.b16 %v407
    %v499 = vunpack.c.h.b16 %v407
    %v500 = vunpack.c.l.b16 %v408
    %v501 = vunpack.c.h.b16 %v408
    %v502 = vunpack.c.l.b16 %v409
    %v503 = vunpack.c.h.b16 %v409
    %v504 = vunpack.c.l.b16 %v410
    %v505 = vunpack.c.h.b16 %v410
    %v506 = vunpack.c.l.b16 %v411
    %v507 = vunpack.c.h.b16 %v411
    %v508 = vunpack.c.l.b16 %v412
    %v509 = vunpack.c.h.b16 %v412
    %v510 = vunpack.c.l.b16 %v413
    %v511 = vunpack.c.h.b16 %v413
    %v512 = vunpack.c.l.b16 %v414
    %v513 = vunpack.c.h.b16 %v414
    %v514 = vunpack.c.l.b16 %v415
    %v515 = vunpack.c.h.b16 %v415
    %v516 = vunpack.c.l.b16 %v416
    %v517 = vunpack.c.h.b16 %v416
    %v518 = vunpack.c.l.b16 %v417
    %v519 = vunpack.c.h.b16 %v417
    %v520 = vunpack.c.l.b16 %v418
    %v521 = vunpack.c.h.b16 %v418
    %v522 = vunpack.c.l.b16 %v419
    %v523 = vunpack.c.h.b16 %v419
    %v524 = vunpack.c.l.b16 %v420
    %v525 = vunpack.c.h.b16 %v420
    %v526 = vunpack.c.l.b16 %v421
    %v527 = vunpack.c.h.b16 %v421
    %v528 = vunpack.c.l.b16 %v422
    %v529 = vunpack.c.h.b16 %v422
    %v530 = vunpack.c.l.b16 %v423
    %v531 = vunpack.c.h.b16 %v423
    %v532 = vunpack.c.l.b16 %v424
    %v533 = vunpack.c.h.b16 %v424
    %v534 = vpack.c.b16 %v472, %v470
    %v535 = vpack.c.b16 %v473, %v471
    %v536 = vpack.c.b16 %v476, %v474
    %v537 = vpack.c.b16 %v477, %v475
    %v538 = vpack.c.b16 %v480, %v478
    %v539 = vpack.c.b16 %v481, %v479
    %v540 = vpack.c.b16 %v484, %v482
    %v541 = vpack.c.b16 %v485, %v483
    %v542 = vpack.c.b16 %v488, %v486
    %v543 = vpack.c.b16 %v489, %v487
    %v544 = vpack.c.b16 %v492, %v490
    %v545 = vpack.c.b16 %v493, %v491
    %v546 = vpack.c.b16 %v496, %v494
    %v547 = vpack.c.b16 %v497, %v495
    %v548 = vpack.c.b16 %v500, %v498
    %v549 = vpack.c.b16 %v501, %v499
    %v550 = vpack.c.b16 %v504, %v502
    %v551 = vpack.c.b16 %v505, %v503
    %v552 = vpack.c.b16 %v508, %v506
    %v553 = vpack.c.b16 %v509, %v507
    %v554 = vpack.c.b16 %v512, %v510
    %v555 = vpack.c.b16 %v513, %v511
    %v556 = vpack.c.b16 %v516, %v514
    %v557 = vpack.c.b16 %v517, %v515
    %v558 = vpack.c.b16 %v520, %v518
    %v559 = vpack.c.b16 %v521, %v519
    %v560 = vpack.c.b16 %v524, %v522
    %v561 = vpack.c.b16 %v525, %v523
    %v562 = vpack.c.b16 %v528, %v526
    %v563 = vpack.c.b16 %v529, %v527
    %v564 = vpack.c.b16 %v532, %v530
    %v565 = vpack.c.b16 %v533, %v531
    %598 = vmatpush.bf16.msra.mxu0 %v548
    %599 = vmatpush.bf16.msra.mxu0 %v546
    %600 = vmatpush.bf16.msra.mxu0 %v544
    %601 = vmatpush.bf16.msra.mxu0 %v542
    %602 = vmatpush.bf16.msra.mxu0 %v540
    %603 = vmatpush.bf16.msra.mxu0 %v538
    %604 = vmatpush.bf16.msra.mxu0 %v536
    %605 = vmatpush.bf16.msra.mxu0 %v534
    %606 = vmatmul.bf16.gmra.mxu0 %v434
    %v607 = vpop.f32.mrf.mxu0
    %v608 = vadd.f32 %v427, %v607
    %v609 = vpop.f32.mrf.mxu0
    %610 = vdwg.mxu0
    %611 = vmatpush.bf16.msra.mxu0 %v564
    %612 = vmatpush.bf16.msra.mxu0 %v562
    %613 = vmatpush.bf16.msra.mxu0 %v560
    %614 = vmatpush.bf16.msra.mxu0 %v558
    %615 = vmatpush.bf16.msra.mxu0 %v556
    %616 = vmatpush.bf16.msra.mxu0 %v554
    %617 = vmatpush.bf16.msra.mxu0 %v552
    %618 = vmatpush.bf16.msra.mxu0 %v550
    %619 = vmatmul.bf16.gmra.mxu0 %v435
    %v620 = vpop.f32.mrf.mxu0
    %v621 = vadd.f32 %v608, %v620
    %v622 = vpop.f32.mrf.mxu0
    %623 = vdwg.mxu0
    %624 = vmatpush.bf16.msra.mxu0 %v549
    %625 = vmatpush.bf16.msra.mxu0 %v547
    %626 = vmatpush.bf16.msra.mxu0 %v545
    %627 = vmatpush.bf16.msra.mxu0 %v543
    %628 = vmatpush.bf16.msra.mxu0 %v541
    %629 = vmatpush.bf16.msra.mxu0 %v539
    %630 = vmatpush.bf16.msra.mxu0 %v537
    %631 = vmatpush.bf16.msra.mxu0 %v535
    %632 = vmatmul.bf16.gmra.mxu0 %v434
    %v633 = vpop.f32.mrf.mxu0
    %v634 = vadd.f32 %v428, %v633
    %v635 = vpop.f32.mrf.mxu0
    %636 = vdwg.mxu0
    %637 = vmatpush.bf16.msra.mxu0 %v565
    %638 = vmatpush.bf16.msra.mxu0 %v563
    %639 = vmatpush.bf16.msra.mxu0 %v561
    %640 = vmatpush.bf16.msra.mxu0 %v559
    %641 = vmatpush.bf16.msra.mxu0 %v557
    %642 = vmatpush.bf16.msra.mxu0 %v555
    %643 = vmatpush.bf16.msra.mxu0 %v553
    %644 = vmatpush.bf16.msra.mxu0 %v551
    %645 = vmatmul.bf16.gmra.mxu0 %v435
    %v646 = vpop.f32.mrf.mxu0
    %v647 = vadd.f32 %v634, %v646
    %v648 = vpop.f32.mrf.mxu0
    %649 = vdwg.mxu0
    %v650 = vxor.u32 %v621, 2147483648
    %v651 = vxor.u32 %v647, 2147483648
    %v652 = vmul.f32 %v650, 1.442695
    %v653 = vpow.pop %v652
    %v654 = vmul.f32 %v651, 1.442695
    %v655 = vpow.pop %v654
    %v656 = vadd.f32 %v653, 1.0
    %v657 = vadd.f32 %v655, 1.0
    %v658 = vrcp.pop %v656
    %v659 = vmul.f32 %v656, %v658
    %v660 = vsub.f32 1.0, %v659
    %v661 = vmul.f32 %v658, %v660
    %v662 = vadd.f32 %v658, %v661
    %vm663 = vweird.f32 %v656
    %vm664 = vweird.f32 %v658
    %vm665 = vmor %vm663, %vm664
    %v666 = vsel %vm665, %v658, %v662
    %v667 = vand.u32 2147483647, %v656
    %vm668 = vcmp.eq.f32.partialorder %v667, 8.507059e+37
    %v669 = vand.u32 %v656, 2147483648
    %v670 = vor.u32 1.1754944e-38, %v669
    %v671 = vsel %vm668, %v670, %v666
    %v672 = vmul.f32 1.0, %v671
    %v673 = vrcp.pop %v657
    %v674 = vmul.f32 %v657, %v673
    %v675 = vsub.f32 1.0, %v674
    %v676 = vmul.f32 %v673, %v675
    %v677 = vadd.f32 %v673, %v676
    %vm678 = vweird.f32 %v657
    %vm679 = vweird.f32 %v673
    %vm680 = vmor %vm678, %vm679
    %v681 = vsel %vm680, %v673, %v677
    %v682 = vand.u32 2147483647, %v657
    %vm683 = vcmp.eq.f32.partialorder %v682, 8.507059e+37
    %v684 = vand.u32 %v657, 2147483648
    %v685 = vor.u32 1.1754944e-38, %v684
    %v686 = vsel %vm683, %v685, %v681
    %v687 = vmul.f32 1.0, %v686
    %v688 = vmul.f32 %v621, %v672
    %v689 = vmul.f32 %v647, %v687
    %v690 = vld [vmem:[#allocation8] sm:$0xff]
    %v691 = vld [vmem:[#allocation8 + $0x8] sm:$0xff]
    %v692 = vpack.c.bf16 %v688, %v688
    %v693 = vpack.c.bf16 %v689, %v689
    %v694 = vld [vmem:[#allocation6] sm:$0xff]
    %v695 = vld [vmem:[#allocation6 + $0x8] sm:$0xff]
    %v696 = vld [vmem:[#allocation6 + $0x10] sm:$0xff]
    %v697 = vld [vmem:[#allocation6 + $0x18] sm:$0xff]
    %v698 = vld [vmem:[#allocation6 + $0x20] sm:$0xff]
    %v699 = vld [vmem:[#allocation6 + $0x28] sm:$0xff]
    %v700 = vld [vmem:[#allocation6 + $0x30] sm:$0xff]
    %v701 = vld [vmem:[#allocation6 + $0x38] sm:$0xff]
    %v702 = vld [vmem:[#allocation6 + $0x40] sm:$0xff]
    %v703 = vld [vmem:[#allocation6 + $0x48] sm:$0xff]
    %v704 = vld [vmem:[#allocation6 + $0x50] sm:$0xff]
    %v705 = vld [vmem:[#allocation6 + $0x58] sm:$0xff]
    %v706 = vld [vmem:[#allocation6 + $0x60] sm:$0xff]
    %v707 = vld [vmem:[#allocation6 + $0x68] sm:$0xff]
    %v708 = vld [vmem:[#allocation6 + $0x70] sm:$0xff]
    %v709 = vld [vmem:[#allocation6 + $0x78] sm:$0xff]
    %v710 = vld [vmem:[#allocation6 + $0x80] sm:$0xff]
    %v711 = vld [vmem:[#allocation6 + $0x88] sm:$0xff]
    %v712 = vld [vmem:[#allocation6 + $0x90] sm:$0xff]
    %v713 = vld [vmem:[#allocation6 + $0x98] sm:$0xff]
    %v714 = vld [vmem:[#allocation6 + $0xa0] sm:$0xff]
    %v715 = vld [vmem:[#allocation6 + $0xa8] sm:$0xff]
    %v716 = vld [vmem:[#allocation6 + $0xb0] sm:$0xff]
    %v717 = vld [vmem:[#allocation6 + $0xb8] sm:$0xff]
    %v718 = vld [vmem:[#allocation6 + $0xc0] sm:$0xff]
    %v719 = vld [vmem:[#allocation6 + $0xc8] sm:$0xff]
    %v720 = vld [vmem:[#allocation6 + $0xd0] sm:$0xff]
    %v721 = vld [vmem:[#allocation6 + $0xd8] sm:$0xff]
    %v722 = vld [vmem:[#allocation6 + $0xe0] sm:$0xff]
    %v723 = vld [vmem:[#allocation6 + $0xe8] sm:$0xff]
    %v724 = vld [vmem:[#allocation6 + $0xf0] sm:$0xff]
    %v725 = vld [vmem:[#allocation6 + $0xf8] sm:$0xff]
    %v758 = vunpack.c.l.b16 %v694
    %v759 = vunpack.c.h.b16 %v694
    %v760 = vunpack.c.l.b16 %v695
    %v761 = vunpack.c.h.b16 %v695
    %v762 = vunpack.c.l.b16 %v696
    %v763 = vunpack.c.h.b16 %v696
    %v764 = vunpack.c.l.b16 %v697
    %v765 = vunpack.c.h.b16 %v697
    %v766 = vunpack.c.l.b16 %v698
    %v767 = vunpack.c.h.b16 %v698
    %v768 = vunpack.c.l.b16 %v699
    %v769 = vunpack.c.h.b16 %v699
    %v770 = vunpack.c.l.b16 %v700
    %v771 = vunpack.c.h.b16 %v700
    %v772 = vunpack.c.l.b16 %v701
    %v773 = vunpack.c.h.b16 %v701
    %v774 = vunpack.c.l.b16 %v702
    %v775 = vunpack.c.h.b16 %v702
    %v776 = vunpack.c.l.b16 %v703
    %v777 = vunpack.c.h.b16 %v703
    %v778 = vunpack.c.l.b16 %v704
    %v779 = vunpack.c.h.b16 %v704
    %v780 = vunpack.c.l.b16 %v705
    %v781 = vunpack.c.h.b16 %v705
    %v782 = vunpack.c.l.b16 %v706
    %v783 = vunpack.c.h.b16 %v706
    %v784 = vunpack.c.l.b16 %v707
    %v785 = vunpack.c.h.b16 %v707
    %v786 = vunpack.c.l.b16 %v708
    %v787 = vunpack.c.h.b16 %v708
    %v788 = vunpack.c.l.b16 %v709
    %v789 = vunpack.c.h.b16 %v709
    %v790 = vunpack.c.l.b16 %v710
    %v791 = vunpack.c.h.b16 %v710
    %v792 = vunpack.c.l.b16 %v711
    %v793 = vunpack.c.h.b16 %v711
    %v794 = vunpack.c.l.b16 %v712
    %v795 = vunpack.c.h.b16 %v712
    %v796 = vunpack.c.l.b16 %v713
    %v797 = vunpack.c.h.b16 %v713
    %v798 = vunpack.c.l.b16 %v714
    %v799 = vunpack.c.h.b16 %v714
    %v800 = vunpack.c.l.b16 %v715
    %v801 = vunpack.c.h.b16 %v715
    %v802 = vunpack.c.l.b16 %v716
    %v803 = vunpack.c.h.b16 %v716
    %v804 = vunpack.c.l.b16 %v717
    %v805 = vunpack.c.h.b16 %v717
    %v806 = vunpack.c.l.b16 %v718
    %v807 = vunpack.c.h.b16 %v718
    %v808 = vunpack.c.l.b16 %v719
    %v809 = vunpack.c.h.b16 %v719
    %v810 = vunpack.c.l.b16 %v720
    %v811 = vunpack.c.h.b16 %v720
    %v812 = vunpack.c.l.b16 %v721
    %v813 = vunpack.c.h.b16 %v721
    %v814 = vunpack.c.l.b16 %v722
    %v815 = vunpack.c.h.b16 %v722
    %v816 = vunpack.c.l.b16 %v723
    %v817 = vunpack.c.h.b16 %v723
    %v818 = vunpack.c.l.b16 %v724
    %v819 = vunpack.c.h.b16 %v724
    %v820 = vunpack.c.l.b16 %v725
    %v821 = vunpack.c.h.b16 %v725
    %v822 = vpack.c.b16 %v760, %v758
    %v823 = vpack.c.b16 %v761, %v759
    %v824 = vpack.c.b16 %v764, %v762
    %v825 = vpack.c.b16 %v765, %v763
    %v826 = vpack.c.b16 %v768, %v766
    %v827 = vpack.c.b16 %v769, %v767
    %v828 = vpack.c.b16 %v772, %v770
    %v829 = vpack.c.b16 %v773, %v771
    %v830 = vpack.c.b16 %v776, %v774
    %v831 = vpack.c.b16 %v777, %v775
    %v832 = vpack.c.b16 %v780, %v778
    %v833 = vpack.c.b16 %v781, %v779
    %v834 = vpack.c.b16 %v784, %v782
    %v835 = vpack.c.b16 %v785, %v783
    %v836 = vpack.c.b16 %v788, %v786
    %v837 = vpack.c.b16 %v789, %v787
    %v838 = vpack.c.b16 %v792, %v790
    %v839 = vpack.c.b16 %v793, %v791
    %v840 = vpack.c.b16 %v796, %v794
    %v841 = vpack.c.b16 %v797, %v795
    %v842 = vpack.c.b16 %v800, %v798
    %v843 = vpack.c.b16 %v801, %v799
    %v844 = vpack.c.b16 %v804, %v802
    %v845 = vpack.c.b16 %v805, %v803
    %v846 = vpack.c.b16 %v808, %v806
    %v847 = vpack.c.b16 %v809, %v807
    %v848 = vpack.c.b16 %v812, %v810
    %v849 = vpack.c.b16 %v813, %v811
    %v850 = vpack.c.b16 %v816, %v814
    %v851 = vpack.c.b16 %v817, %v815
    %v852 = vpack.c.b16 %v820, %v818
    %v853 = vpack.c.b16 %v821, %v819
    %886 = vmatpush.bf16.msra.mxu0 %v836
    %887 = vmatpush.bf16.msra.mxu0 %v834
    %888 = vmatpush.bf16.msra.mxu0 %v832
    %889 = vmatpush.bf16.msra.mxu0 %v830
    %890 = vmatpush.bf16.msra.mxu0 %v828
    %891 = vmatpush.bf16.msra.mxu0 %v826
    %892 = vmatpush.bf16.msra.mxu0 %v824
    %893 = vmatpush.bf16.msra.mxu0 %v822
    %894 = vmatmul.bf16.gmra.mxu0 %v692
    %v895 = vpop.f32.mrf.mxu0
    %v896 = vadd.f32 0.0, %v895
    %v897 = vpop.f32.mrf.mxu0
    %898 = vdwg.mxu0
    %899 = vmatpush.bf16.msra.mxu0 %v852
    %900 = vmatpush.bf16.msra.mxu0 %v850
    %901 = vmatpush.bf16.msra.mxu0 %v848
    %902 = vmatpush.bf16.msra.mxu0 %v846
    %903 = vmatpush.bf16.msra.mxu0 %v844
    %904 = vmatpush.bf16.msra.mxu0 %v842
    %905 = vmatpush.bf16.msra.mxu0 %v840
    %906 = vmatpush.bf16.msra.mxu0 %v838
    %907 = vmatmul.bf16.gmra.mxu0 %v693
    %v908 = vpop.f32.mrf.mxu0
    %v909 = vadd.f32 %v896, %v908
    %v910 = vpop.f32.mrf.mxu0
    %911 = vdwg.mxu0
    %912 = vmatpush.bf16.msra.mxu0 %v837
    %913 = vmatpush.bf16.msra.mxu0 %v835
    %914 = vmatpush.bf16.msra.mxu0 %v833
    %915 = vmatpush.bf16.msra.mxu0 %v831
    %916 = vmatpush.bf16.msra.mxu0 %v829
    %917 = vmatpush.bf16.msra.mxu0 %v827
    %918 = vmatpush.bf16.msra.mxu0 %v825
    %919 = vmatpush.bf16.msra.mxu0 %v823
    %920 = vmatmul.bf16.gmra.mxu0 %v692
    %v921 = vpop.f32.mrf.mxu0
    %v922 = vadd.f32 0.0, %v921
    %v923 = vpop.f32.mrf.mxu0
    %924 = vdwg.mxu0
    %925 = vmatpush.bf16.msra.mxu0 %v853
    %926 = vmatpush.bf16.msra.mxu0 %v851
    %927 = vmatpush.bf16.msra.mxu0 %v849
    %928 = vmatpush.bf16.msra.mxu0 %v847
    %929 = vmatpush.bf16.msra.mxu0 %v845
    %930 = vmatpush.bf16.msra.mxu0 %v843
    %931 = vmatpush.bf16.msra.mxu0 %v841
    %932 = vmatpush.bf16.msra.mxu0 %v839
    %933 = vmatmul.bf16.gmra.mxu0 %v693
    %v934 = vpop.f32.mrf.mxu0
    %v935 = vadd.f32 %v922, %v934
    %v936 = vpop.f32.mrf.mxu0
    %937 = vdwg.mxu0
    %v938 = vadd.f32 %v690, %v909
    %v939 = vadd.f32 %v691, %v935
    %940 = vst [vmem:[#allocation8] sm:$0xff] %v938
    %941 = vst [vmem:[#allocation8 + $0x8] sm:$0xff] %v939
    // Predicated region
    $region38: #{tpu_custom_call.1} parent=1 // pred_check
      _
    $region39: #{tpu_custom_call.1} parent=1 // pred_check_branch
      %943 = sbr.rel (0) target = $region41
    $region40: #{tpu_custom_call.1} parent=1 // pred_region
      %945 = vsyncadd [#allocation5], 0
      %s947 = sshll.u32 [#allocation8], 4
      %s948 = int_to_ptr.vmem [resolvable:$true] %s947
      %s949 = sshll.u32 %s6, 4
      %s950 = int_to_ptr.hbm [resolvable:$true] %s949
      %952 = dma.vmem_to_hbm [thread:$0]  %s948, 256, %s950, [#allocation5]
    $region41: #{tpu_custom_call.1} parent=1 // pred_fallthru
      _
    // Predicated region
    $region42: #{tpu_custom_call.1} parent=1 // pred_check
      _
    $region43: #{tpu_custom_call.1} parent=1 // pred_check_branch
      %954 = sbr.rel (0) target = $region45
    $region44: #{tpu_custom_call.1} parent=1 // pred_region
      %956 = dma.done [#allocation5], 256
    $region45: #{tpu_custom_call.1} parent=1 // pred_fallthru
      _
    %957 = vsyncpa [#allocation4], 1
    %958 = vsyncpa [#allocation7], 1
    %959 = vsyncpa [#allocation5], 1

</llo_original>
